<compile_context>
chip_gen: v5e
topology: v5e:2x2
jax: 0.10.0
libtpu: 0.0.40
codegen_flags: <defaults>
</compile_context>

<pallas_src>
import math

import jax
import jax.numpy as jnp
from jax import lax
from jax.experimental import pallas as pl
from jax.experimental.pallas import tpu as pltpu

MARGIN = 0.2  # FourierEmb margin (module default)


def _round_up(x, m):
    return (x + m - 1) // m * m


# ---------------------------------------------------------------------------
# Kernel 1: per-batch softmax channel weights from Fourier positional emb.
# ---------------------------------------------------------------------------
def weights_kernel(pos_ref, px_ref, py_ref, hcos_ref, hsin_ref, w_ref):
    # pos_ref : (1, 2, C)  positions for batch b, transposed, MARGIN folded in
    # px_ref  : (F2, 1)    2*pi*freq_x/width (repeat-major), column vector
    # py_ref  : (F2, 1)    2*pi*freq_y/width (tile-minor),   column vector
    # hcos_ref: (O, F2)    heads[:, :F2]  (pairs with cos)
    # hsin_ref: (O, F2)    heads[:, F2:]  (pairs with sin)
    # w_ref   : (1, O, C)  softmax weights output (f32)
    pos = pos_ref[0]                                     # (2, C)
    posx = pos[0:1, :]                                   # (1, C)  x + margin
    posy = pos[1:2, :]                                   # (1, C)  y + margin

    # loc_T[k, c] = (x_c + m) * px[k] + (y_c + m) * py[k]        -> (F2, C)
    loc_t = px_ref[...] * posx + py_ref[...] * posy

    # scores = heads_cos @ cos(loc_T) + heads_sin @ sin(loc_T)   -> (O, C)
    # (== torch.einsum('bcd,bod->boc') with emb = [cos | sin], no lane concat)
    scores = lax.dot_general(
        hcos_ref[...], jnp.cos(loc_t),
        dimension_numbers=(((1,), (0,)), ((), ())),
        preferred_element_type=jnp.float32)
    scores = scores + lax.dot_general(
        hsin_ref[...], jnp.sin(loc_t),
        dimension_numbers=(((1,), (0,)), ((), ())),
        preferred_element_type=jnp.float32)

    # softmax over channels (torch dim=2); eval path -> score_offset == 0.
    # Exact division (not approx reciprocal): weights sum to 1, and the merge
    # kernel is memory-bound so exactness is free.
    m = jnp.max(scores, axis=-1, keepdims=True)
    e = jnp.exp(scores - m)
    w_ref[0] = e / jnp.sum(e, axis=-1, keepdims=True)


# ---------------------------------------------------------------------------
# Kernel 2: time-tiled channel merge  out[b, :, t0:t1] = W[b] @ eeg[b, t0:t1].T
# ---------------------------------------------------------------------------
def merge_kernel(w_ref, eeg_ref, out_ref):
    # w_ref  : (1, O, C)   precomputed softmax weights
    # eeg_ref: (1, tT, C)  eeg in native (B, T, C) layout (no HBM transpose)
    # out_ref: (1, O, tT)  lane-dense output block
    out_ref[0] = lax.dot_general(
        w_ref[0], eeg_ref[0],
        dimension_numbers=(((1,), (1,)), ((), ())),      # contract over C
        preferred_element_type=jnp.float32).astype(out_ref.dtype)


# ---------------------------------------------------------------------------
# Wrapper
# ---------------------------------------------------------------------------
def _choose_time_tile(T, budget_bytes, bytes_per_t, time_tile):
    """Largest time tile (multiple of 128, preferably dividing T) in budget."""
    tmax = budget_bytes // max(bytes_per_t, 1)
    if time_tile is not None:
        tmax = min(tmax, time_tile)
    if tmax >= T:
        return T                                  # single full-T tile
    tmax = max(128, (tmax // 128) * 128)
    # Prefer a multiple of 128 that divides T (keeps output stores unmasked).
    t = tmax
    while t >= 128:
        if T % t == 0:
            return t
        t -= 128
    return tmax                                   # ragged tail (still correct)


def channel_merger_forward(eeg_btc, positions, heads, *, time_tile=None):
    """eeg_btc: (B, T, C) f32; positions: (B, C, 2) f32; heads: (O, D) f32.

    Returns (B, O, T) f32, matching torch.einsum('bct,boc->bot').
    """
    B, T, C = eeg_btc.shape
    O, D = heads.shape
    n_freqs = int(round((D // 2) ** 0.5))
    assert n_freqs * n_freqs * 2 == D, "pos_dim must be 2 * k^2"
    F2 = n_freqs * n_freqs

    eeg_btc = eeg_btc.astype(jnp.float32)
    heads = heads.astype(jnp.float32)

    # Frequency tables (torch: loc[..., i, j] = x*p_x[i] + y*p_y[j], k = i*n+j)
    width = 1.0 + 2.0 * MARGIN
    freqs = 2.0 * math.pi * jnp.arange(n_freqs, dtype=jnp.float32) / width
    px = jnp.repeat(freqs, n_freqs).reshape(F2, 1)       # freqs_x, repeat-major
    py = jnp.tile(freqs, n_freqs).reshape(F2, 1)         # freqs_y, tile-minor
    heads_cos = heads[:, :F2]                            # pairs with cos(loc)
    heads_sin = heads[:, F2:]                            # pairs with sin(loc)

    # (B, C, 2) -> (B, 2, C) is a tiny (B*C*2 floats) layout fixup; eeg itself
    # is NOT transposed in HBM (that extra full round trip dominated before).
    pos_t = jnp.transpose(positions.astype(jnp.float32), (0, 2, 1)) + MARGIN

    # --- kernel 1: per-batch softmax channel weights (B, O, C) --------------
    weights = pl.pallas_call(
        weights_kernel,
        out_shape=jax.ShapeDtypeStruct((B, O, C), jnp.float32),
        grid_spec=pltpu.PrefetchScalarGridSpec(
            num_scalar_prefetch=0,
            grid=(B,),
            in_specs=[
                pl.BlockSpec((1, 2, C), lambda b: (b, 0, 0)),   # positions
                pl.BlockSpec((F2, 1), lambda b: (0, 0)),        # px
                pl.BlockSpec((F2, 1), lambda b: (0, 0)),        # py
                pl.BlockSpec((O, F2), lambda b: (0, 0)),        # heads_cos
                pl.BlockSpec((O, F2), lambda b: (0, 0)),        # heads_sin
            ],
            out_specs=pl.BlockSpec((1, O, C), lambda b: (b, 0, 0)),
        ),
        compiler_params=pltpu.CompilerParams(
            dimension_semantics=("parallel",)),
    )(pos_t, px, py, heads_cos, heads_sin)

    # --- kernel 2: time-tiled merge, tile sized from VMEM capacity ----------
    try:
        vmem_cap = int(pltpu.get_tpu_info().vmem_capacity_bytes)
    except Exception:
        vmem_cap = 64 << 20          # conservative (v7x-sized) fallback
    if vmem_cap <= 0:
        vmem_cap = 64 << 20

    c_lanes = _round_up(C, 128)      # eeg tile: C is the lane dim
    o_rows = _round_up(O, 8)         # out tile: O is the sublane dim
    w_bytes = 2 * 4 * o_rows * c_lanes                    # weights (dbl-buffered)
    bytes_per_t = 2 * 4 * c_lanes + 2 * 4 * o_rows        # dbl-buffered eeg + out
    tile_budget = max(vmem_cap - (20 << 20), 8 << 20) - w_bytes
    tile_budget = max(tile_budget, 2 << 20)
    tT = _choose_time_tile(T, tile_budget, bytes_per_t, time_tile)
    n_t = pl.cdiv(T, tT)

    # VMEM limit sized from the chosen tile (never below the requirement).
    vmem_limit = bytes_per_t * _round_up(tT, 128) + w_bytes + (4 << 20)
    vmem_limit = int(min(max(vmem_limit, 32 << 20), vmem_cap - (2 << 20)))

    return pl.pallas_call(
        merge_kernel,
        out_shape=jax.ShapeDtypeStruct((B, O, T), jnp.float32),
        grid_spec=pltpu.PrefetchScalarGridSpec(
            num_scalar_prefetch=0,
            grid=(B, n_t),
            in_specs=[
                pl.BlockSpec((1, O, C), lambda b, t: (b, 0, 0)),   # weights
                pl.BlockSpec((1, tT, C), lambda b, t: (b, t, 0)),  # eeg (B,T,C)
            ],
            out_specs=pl.BlockSpec((1, O, tT), lambda b, t: (b, 0, t)),
        ),
        compiler_params=pltpu.CompilerParams(
            dimension_semantics=("parallel", "parallel"),
            vmem_limit_bytes=vmem_limit),
    )(weights, eeg_btc)


def channel_merger_ref(eeg_btc, positions, heads):
    """Pure-JAX reference mirroring the PyTorch forward (eval mode, f32)."""
    B, T, C = eeg_btc.shape
    O, D = heads.shape
    n_freqs = int(round((D // 2) ** 0.5))
    width = 1.0 + 2.0 * MARGIN
    freqs = jnp.arange(n_freqs, dtype=jnp.float32)
    pos = positions + MARGIN
    p_x = 2.0 * math.pi * freqs[:, None] / width          # (F, 1)
    p_y = 2.0 * math.pi * freqs / width                   # (F,)
    loc = pos[..., None, None, 0] * p_x + pos[..., None, None, 1] * p_y
    loc = loc.reshape(B, C, -1)
    emb = jnp.concatenate([jnp.cos(loc), jnp.sin(loc)], axis=-1)
    scores = jnp.einsum('bcd,od->boc', emb, heads)
    weights = jax.nn.softmax(scores, axis=2)
    eeg = jnp.transpose(eeg_btc, (0, 2, 1))                # (B, C, T)
    return jnp.einsum('bct,boc->bot', eeg, weights)


if __name__ == "__main__":
    B, T, C = 2, 256, 4        # batch, time, eeg channels
    chout, pos_dim = 4, 32     # pos_dim = 2 * 4^2, divisible by 4

    key = jax.random.PRNGKey(0)
    k_eeg, k_pos, k_heads = jax.random.split(key, 3)
    eeg = jax.random.normal(k_eeg, (B, T, C), dtype=jnp.float32)
    positions = jax.random.uniform(k_pos, (B, C, 2), dtype=jnp.float32)
    # nn.Parameter(torch.randn(chout, pos_dim)) / sqrt(pos_dim), deterministic here
    heads = jax.random.normal(k_heads, (chout, pos_dim),
                              dtype=jnp.float32) / math.sqrt(pos_dim)

    ref = channel_merger_ref(eeg, positions, heads)

    # time_tile=128 exercises the multi-tile path (grid = (B, 2)); the default
    # path auto-sizes the tile from VMEM (single full-T tile here).
    out_tiled = jax.block_until_ready(
        channel_merger_forward(eeg, positions, heads, time_tile=128))
    out_auto = jax.block_until_ready(
        channel_merger_forward(eeg, positions, heads))

    assert out_tiled.shape == (B, chout, T), out_tiled.shape
    assert out_auto.shape == (B, chout, T), out_auto.shape
    # f32 end-to-end + exact softmax: near-f32 parity with the reference.
    for out in (out_tiled, out_auto):
        max_err = float(jnp.max(jnp.abs(out - ref)))
        assert jnp.allclose(out, ref, atol=1e-3, rtol=1e-3), max_err
    print("KERNEL_OK")
</pallas_src>

<mosaic_0001>
module attributes {stable_mosaic.version = 11 : i64} {
  func.func @weights_kernel(%arg0: i32, %arg1: memref<1x2x4xf32, #tpu.memory_space<vmem>>, %arg2: memref<16x1xf32, #tpu.memory_space<vmem>>, %arg3: memref<16x1xf32, #tpu.memory_space<vmem>>, %arg4: memref<4x16xf32, #tpu.memory_space<vmem>>, %arg5: memref<4x16xf32, #tpu.memory_space<vmem>>, %arg6: memref<1x4x4xf32, #tpu.memory_space<vmem>>) attributes {dimension_semantics = [#tpu.dimension_semantics<parallel>], iteration_bounds = array<i64: 2>, scalar_prefetch = 0 : i64, scratch_operands = 0 : i64, tpu.core_type = #tpu.core_type<tc>, window_params = [{transform_indices = @transform_0, window_bounds = array<i64: 1, 2, 4>}, {pipeline_mode = #tpu.pipeline_mode<synchronous>, transform_indices = @transform_1, window_bounds = array<i64: 16, 1>}, {pipeline_mode = #tpu.pipeline_mode<synchronous>, transform_indices = @transform_2, window_bounds = array<i64: 16, 1>}, {pipeline_mode = #tpu.pipeline_mode<synchronous>, transform_indices = @transform_3, window_bounds = array<i64: 4, 16>}, {pipeline_mode = #tpu.pipeline_mode<synchronous>, transform_indices = @transform_4, window_bounds = array<i64: 4, 16>}, {transform_indices = @transform_5, window_bounds = array<i64: 1, 4, 4>}]} {
    %c0 = arith.constant 0 : index
    %c0_0 = arith.constant 0 : index
    %c0_1 = arith.constant 0 : index
    %0 = vector.load %arg1[%c0, %c0_0, %c0_1] : memref<1x2x4xf32, #tpu.memory_space<vmem>>, vector<1x2x4xf32>
    %1 = vector.shape_cast %0 : vector<1x2x4xf32> to vector<2x4xf32>
    %2 = vector.extract_strided_slice %1 {offsets = [0, 0], sizes = [1, 4], strides = [1, 1]} : vector<2x4xf32> to vector<1x4xf32>
    %3 = vector.extract_strided_slice %1 {offsets = [1, 0], sizes = [1, 4], strides = [1, 1]} : vector<2x4xf32> to vector<1x4xf32>
    %c0_2 = arith.constant 0 : index
    %c0_3 = arith.constant 0 : index
    %4 = vector.load %arg2[%c0_2, %c0_3] : memref<16x1xf32, #tpu.memory_space<vmem>>, vector<16x1xf32>
    %5 = vector.broadcast %4 : vector<16x1xf32> to vector<16x4xf32>
    %6 = vector.broadcast %2 : vector<1x4xf32> to vector<16x4xf32>
    %7 = arith.mulf %5, %6 : vector<16x4xf32>
    %c0_4 = arith.constant 0 : index
    %c0_5 = arith.constant 0 : index
    %8 = vector.load %arg3[%c0_4, %c0_5] : memref<16x1xf32, #tpu.memory_space<vmem>>, vector<16x1xf32>
    %9 = vector.broadcast %8 : vector<16x1xf32> to vector<16x4xf32>
    %10 = vector.broadcast %3 : vector<1x4xf32> to vector<16x4xf32>
    %11 = arith.mulf %9, %10 : vector<16x4xf32>
    %12 = arith.addf %7, %11 : vector<16x4xf32>
    %c0_6 = arith.constant 0 : index
    %c0_7 = arith.constant 0 : index
    %13 = vector.load %arg4[%c0_6, %c0_7] : memref<4x16xf32, #tpu.memory_space<vmem>>, vector<4x16xf32>
    %14 = math.cos %12 : vector<16x4xf32>
    %cst = arith.constant dense<0.000000e+00> : vector<4x4xf32>
    %15 = tpu.matmul %13, %14, %cst {dimension_numbers = #tpu.dot_dimension_numbers<[1], [0], [0], [1], [0, 0, 1, 1], [], []>} : vector<4x16xf32>, vector<16x4xf32>, vector<4x4xf32> -> vector<4x4xf32>
    %c0_8 = arith.constant 0 : index
    %c0_9 = arith.constant 0 : index
    %16 = vector.load %arg5[%c0_8, %c0_9] : memref<4x16xf32, #tpu.memory_space<vmem>>, vector<4x16xf32>
    %17 = math.sin %12 : vector<16x4xf32>
    %cst_10 = arith.constant dense<0.000000e+00> : vector<4x4xf32>
    %18 = tpu.matmul %16, %17, %cst_10 {dimension_numbers = #tpu.dot_dimension_numbers<[1], [0], [0], [1], [0, 0, 1, 1], [], []>} : vector<4x16xf32>, vector<16x4xf32>, vector<4x4xf32> -> vector<4x4xf32>
    %19 = arith.addf %15, %18 : vector<4x4xf32>
    %cst_11 = arith.constant dense<0xFF800000> : vector<4xf32>
    %20 = vector.multi_reduction <maximumf>, %19, %cst_11 [1] : vector<4x4xf32> to vector<4xf32>
    %21 = vector.shape_cast %20 : vector<4xf32> to vector<4x1xf32>
    %22 = vector.broadcast %21 : vector<4x1xf32> to vector<4x4xf32>
    %23 = arith.subf %19, %22 : vector<4x4xf32>
    %24 = math.exp %23 : vector<4x4xf32>
    %cst_12 = arith.constant dense<0.000000e+00> : vector<4xf32>
    %25 = vector.multi_reduction <add>, %24, %cst_12 [1] : vector<4x4xf32> to vector<4xf32>
    %26 = vector.shape_cast %25 : vector<4xf32> to vector<4x1xf32>
    %27 = vector.broadcast %26 : vector<4x1xf32> to vector<4x4xf32>
    %28 = arith.divf %24, %27 : vector<4x4xf32>
    %c0_13 = arith.constant 0 : index
    %c0_14 = arith.constant 0 : index
    %c0_15 = arith.constant 0 : index
    %29 = vector.load %arg6[%c0_13, %c0_14, %c0_15] : memref<1x4x4xf32, #tpu.memory_space<vmem>>, vector<1x4x4xf32>
    %30 = vector.shape_cast %29 : vector<1x4x4xf32> to vector<4x4xf32>
    %31 = vector.shape_cast %28 : vector<4x4xf32> to vector<1x4x4xf32>
    tpu.vector_store %arg6[%c0_13, %c0_14, %c0_15], %31 {strides = array<i32>} : memref<1x4x4xf32, #tpu.memory_space<vmem>>, vector<1x4x4xf32>,
    return
  }
  func.func @transform_0(%arg0: i32) -> (i32, i32, i32) {
    %c0_i32 = arith.constant 0 : i32
    %c0_i32_0 = arith.constant 0 : i32
    %c0_i32_1 = arith.constant 0 : i32
    return %arg0, %c0_i32, %c0_i32_0 : i32, i32, i32
  }
  func.func @transform_1(%arg0: i32) -> (i32, i32) {
    %c0_i32 = arith.constant 0 : i32
    %c0_i32_0 = arith.constant 0 : i32
    %c0_i32_1 = arith.constant 0 : i32
    return %c0_i32, %c0_i32_0 : i32, i32
  }
  func.func @transform_2(%arg0: i32) -> (i32, i32) {
    %c0_i32 = arith.constant 0 : i32
    %c0_i32_0 = arith.constant 0 : i32
    %c0_i32_1 = arith.constant 0 : i32
    return %c0_i32, %c0_i32_0 : i32, i32
  }
  func.func @transform_3(%arg0: i32) -> (i32, i32) {
    %c0_i32 = arith.constant 0 : i32
    %c0_i32_0 = arith.constant 0 : i32
    %c0_i32_1 = arith.constant 0 : i32
    return %c0_i32, %c0_i32_0 : i32, i32
  }
  func.func @transform_4(%arg0: i32) -> (i32, i32) {
    %c0_i32 = arith.constant 0 : i32
    %c0_i32_0 = arith.constant 0 : i32
    %c0_i32_1 = arith.constant 0 : i32
    return %c0_i32, %c0_i32_0 : i32, i32
  }
  func.func @transform_5(%arg0: i32) -> (i32, i32, i32) {
    %c0_i32 = arith.constant 0 : i32
    %c0_i32_0 = arith.constant 0 : i32
    %c0_i32_1 = arith.constant 0 : i32
    return %arg0, %c0_i32, %c0_i32_0 : i32, i32, i32
  }
}

</mosaic_0001>

<llo_original>
// kernel: tpu_custom_call.1
$region0: #{tpu_custom_call.1}
  #allocation0 [shape = 'u32[]', space=smem, size = 0x4, offset = 0x4, fixed_abs, tag = 'smem constant byte address 0x4 - core index']
  #allocation1 [shape = 'u32[72,128]{1,0:T(1,128)}', space=vmem, size = 0x9000, scoped, tag = 'internal scratch']
  %s0 = inlined_call_operand.vmem [shape: f32[2,2,4], index: 0, kind: input, shape index: {}]
  %s1 = inlined_call_operand.vmem [shape: f32[16,1], index: 1, kind: input, shape index: {}]
  %s2 = inlined_call_operand.vmem [shape: f32[16,1], index: 2, kind: input, shape index: {}]
  %s3 = inlined_call_operand.vmem [shape: f32[4,16], index: 3, kind: input, shape index: {}]
  %s4 = inlined_call_operand.vmem [shape: f32[4,16], index: 4, kind: input, shape index: {}]
  %s5 = inlined_call_operand.hbm [shape: f32[2,4,4], index: 5, kind: output, shape index: {}]
  %s6 = sld [smem:[#allocation0]]
  $region53: #{tpu_custom_call.1} parent=0
    _
  %s8 = ssub.s32 1, %s6
  %s9 = scalar_select 0, %s8, %s6
  $region1: #{tpu_custom_call.1} parent=0
    #allocation2 [shape = 'u8[4096]{0}', space=vmem, size = 0x1000, scoped, tag = 'output window, operand 0']
    #allocation3 [shape = 's32[2]{0}', space=sflag, size = 0x8, scoped, tag = 'scoped memory for tpu_custom_call.1']
    %10 = vsyncpa [#allocation3], 0
    %s11 = scalar_lea.sflag [#allocation3], 1
    %12 = vsyncpa %s11, 0
    loop: start=0, step=1, limit=4
    $region2: #{tpu_custom_call.1} parent=1 // loop_pre_header
      _
    $region3: #{tpu_custom_call.1} parent=1 // loop_header
      %s14 = sphi 0, %s18
      %p15 = scmp.ge.s32.totalorder %s14, 4
      %s24 = sphi 0, %s26
      %s27 = sphi 0, %s24
      %s28 = sphi 0, %s27
      %s44 = sphi 0, %s28
      %s48 = sphi 0, %s48
      %s50 = sphi 0, %s48
      %s51 = sphi 0, %s50
      %s65 = sphi 0, %s51
      %s69 = sphi 0, %s69
      %s71 = sphi 0, %s69
      %s72 = sphi 0, %s71
      %s86 = sphi 0, %s72
      %s90 = sphi 0, %s90
      %s92 = sphi 0, %s90
      %s93 = sphi 0, %s92
      %s107 = sphi 0, %s93
      %s111 = sphi 0, %s111
      %s113 = sphi 0, %s111
      %s114 = sphi 0, %s113
      %s128 = sphi 0, %s114
      %s134 = sphi 0, %s136
      %s137 = sphi 0, %s134
      %s138 = sphi 0, %s137
      %s154 = sphi 0, %s138
    $region4: #{tpu_custom_call.1} parent=1 // loop_header_branch
      %17 = sbr.rel (%p15) target = $region8
    $region5: #{tpu_custom_call.1} parent=1 // loop_body
      %s19 = ssub.s32 %s14, 1
      %s20 = ssub.s32 %s14, 2
      %s21 = sadd.s32 %s14, 1
      %s22 = ssub.s32 %s14, %s21
      %p23 = scmp.eq.s32.totalorder %s22, 0
      %s25 = sadd.s32 %s24, 1
      %s26 = scalar_select %p23, %s24, %s25
      %p29 = pneg %p23
      %p30 = scmp.eq.s32.totalorder %s14, 1
      %p31 = por %p29, %p30
      %p32 = scmp.ne.s32.totalorder %s24, %s27
      %p33 = scmp.eq.s32.totalorder %s14, 0
      %p34 = por %p32, %p33
      %p35 = scmp.ne.s32.totalorder %s24, %s27
      %p36 = scmp.eq.s32.totalorder %s19, 1
      %p37 = por %p35, %p36
      %p38 = scmp.ne.s32.totalorder %s27, %s28
      %p39 = scmp.eq.s32.totalorder %s19, 0
      %p40 = por %p38, %p39
      %p41 = scmp.ne.s32.totalorder %s27, %s28
      %p42 = scmp.eq.s32.totalorder %s20, 1
      %p43 = por %p41, %p42
      %p45 = scmp.ne.s32.totalorder %s28, %s44
      %p46 = scmp.eq.s32.totalorder %s20, 0
      %p47 = por %p45, %p46
      %s49 = sadd.s32 %s48, 1
      %p52 = scmp.eq.s32.totalorder %s14, 1
      %p53 = scmp.ne.s32.totalorder %s48, %s50
      %p54 = scmp.eq.s32.totalorder %s14, 0
      %p55 = por %p53, %p54
      %p56 = scmp.ne.s32.totalorder %s48, %s50
      %p57 = scmp.eq.s32.totalorder %s19, 1
      %p58 = por %p56, %p57
      %p59 = scmp.ne.s32.totalorder %s50, %s51
      %p60 = scmp.eq.s32.totalorder %s19, 0
      %p61 = por %p59, %p60
      %p62 = scmp.ne.s32.totalorder %s50, %s51
      %p63 = scmp.eq.s32.totalorder %s20, 1
      %p64 = por %p62, %p63
      %p66 = scmp.ne.s32.totalorder %s51, %s65
      %p67 = scmp.eq.s32.totalorder %s20, 0
      %p68 = por %p66, %p67
      %s70 = sadd.s32 %s69, 1
      %p73 = scmp.eq.s32.totalorder %s14, 1
      %p74 = scmp.ne.s32.totalorder %s69, %s71
      %p75 = scmp.eq.s32.totalorder %s14, 0
      %p76 = por %p74, %p75
      %p77 = scmp.ne.s32.totalorder %s69, %s71
      %p78 = scmp.eq.s32.totalorder %s19, 1
      %p79 = por %p77, %p78
      %p80 = scmp.ne.s32.totalorder %s71, %s72
      %p81 = scmp.eq.s32.totalorder %s19, 0
      %p82 = por %p80, %p81
      %p83 = scmp.ne.s32.totalorder %s71, %s72
      %p84 = scmp.eq.s32.totalorder %s20, 1
      %p85 = por %p83, %p84
      %p87 = scmp.ne.s32.totalorder %s72, %s86
      %p88 = scmp.eq.s32.totalorder %s20, 0
      %p89 = por %p87, %p88
      %s91 = sadd.s32 %s90, 1
      %p94 = scmp.eq.s32.totalorder %s14, 1
      %p95 = scmp.ne.s32.totalorder %s90, %s92
      %p96 = scmp.eq.s32.totalorder %s14, 0
      %p97 = por %p95, %p96
      %p98 = scmp.ne.s32.totalorder %s90, %s92
      %p99 = scmp.eq.s32.totalorder %s19, 1
      %p100 = por %p98, %p99
      %p101 = scmp.ne.s32.totalorder %s92, %s93
      %p102 = scmp.eq.s32.totalorder %s19, 0
      %p103 = por %p101, %p102
      %p104 = scmp.ne.s32.totalorder %s92, %s93
      %p105 = scmp.eq.s32.totalorder %s20, 1
      %p106 = por %p104, %p105
      %p108 = scmp.ne.s32.totalorder %s93, %s107
      %p109 = scmp.eq.s32.totalorder %s20, 0
      %p110 = por %p108, %p109
      %s112 = sadd.s32 %s111, 1
      %p115 = scmp.eq.s32.totalorder %s14, 1
      %p116 = scmp.ne.s32.totalorder %s111, %s113
      %p117 = scmp.eq.s32.totalorder %s14, 0
      %p118 = por %p116, %p117
      %p119 = scmp.ne.s32.totalorder %s111, %s113
      %p120 = scmp.eq.s32.totalorder %s19, 1
      %p121 = por %p119, %p120
      %p122 = scmp.ne.s32.totalorder %s113, %s114
      %p123 = scmp.eq.s32.totalorder %s19, 0
      %p124 = por %p122, %p123
      %p125 = scmp.ne.s32.totalorder %s113, %s114
      %p126 = scmp.eq.s32.totalorder %s20, 1
      %p127 = por %p125, %p126
      %p129 = scmp.ne.s32.totalorder %s114, %s128
      %p130 = scmp.eq.s32.totalorder %s20, 0
      %p131 = por %p129, %p130
      %s132 = ssub.s32 %s14, %s21
      %p133 = scmp.eq.s32.totalorder %s132, 0
      %s135 = sadd.s32 %s134, 1
      %s136 = scalar_select %p133, %s134, %s135
      %p139 = pneg %p133
      %p140 = scmp.eq.s32.totalorder %s14, 1
      %p141 = por %p139, %p140
      %p142 = scmp.ne.s32.totalorder %s134, %s137
      %p143 = scmp.eq.s32.totalorder %s14, 0
      %p144 = por %p142, %p143
      %p145 = scmp.ne.s32.totalorder %s134, %s137
      %p146 = scmp.eq.s32.totalorder %s19, 1
      %p147 = por %p145, %p146
      %p148 = scmp.ne.s32.totalorder %s137, %s138
      %p149 = scmp.eq.s32.totalorder %s19, 0
      %p150 = por %p148, %p149
      %p151 = scmp.ne.s32.totalorder %s137, %s138
      %p152 = scmp.eq.s32.totalorder %s20, 1
      %p153 = por %p151, %p152
      %p155 = scmp.ne.s32.totalorder %s138, %s154
      %p156 = scmp.eq.s32.totalorder %s20, 0
      %p157 = por %p155, %p156
      %p158 = scmp.le.s32.totalorder 1, %s14
      %p159 = scmp.lt.s32.totalorder %s14, 3
      %p160 = pnand %p158, %p159
      %p161 = pneg %p160
      // Predicated region
      $region9: #{tpu_custom_call.1} parent=5 // pred_check
        _
      $region10: #{tpu_custom_call.1} parent=5 // pred_check_branch
        %163 = sbr.rel (%p160) target = $region12
      $region11: #{tpu_custom_call.1} parent=5 // pred_region
        %s164 = ssub.s32 %s14, 1
        // Predicated region
        $region13: #{tpu_custom_call.1} parent=11 // pred_check
          %p165 = pneg %p61
        $region14: #{tpu_custom_call.1} parent=11 // pred_check_branch
          %167 = sbr.rel (%p165) target = $region16
        $region15: #{tpu_custom_call.1} parent=11 // pred_region
          _
        $region16: #{tpu_custom_call.1} parent=11 // pred_fallthru
          _
        // Predicated region
        $region17: #{tpu_custom_call.1} parent=11 // pred_check
          %p168 = pneg %p82
        $region18: #{tpu_custom_call.1} parent=11 // pred_check_branch
          %170 = sbr.rel (%p168) target = $region20
        $region19: #{tpu_custom_call.1} parent=11 // pred_region
          _
        $region20: #{tpu_custom_call.1} parent=11 // pred_fallthru
          _
        // Predicated region
        $region21: #{tpu_custom_call.1} parent=11 // pred_check
          %p171 = pneg %p103
        $region22: #{tpu_custom_call.1} parent=11 // pred_check_branch
          %173 = sbr.rel (%p171) target = $region24
        $region23: #{tpu_custom_call.1} parent=11 // pred_region
          _
        $region24: #{tpu_custom_call.1} parent=11 // pred_fallthru
          _
        // Predicated region
        $region25: #{tpu_custom_call.1} parent=11 // pred_check
          %p174 = pneg %p124
        $region26: #{tpu_custom_call.1} parent=11 // pred_check_branch
          %176 = sbr.rel (%p174) target = $region28
        $region27: #{tpu_custom_call.1} parent=11 // pred_region
          _
        $region28: #{tpu_custom_call.1} parent=11 // pred_fallthru
          _
      $region12: #{tpu_custom_call.1} parent=5 // pred_fallthru
        _
      %p177 = scmp.lt.s32.totalorder %s14, 2
      // Predicated region
      $region29: #{tpu_custom_call.1} parent=5 // pred_check
        %p178 = pneg %p177
      $region30: #{tpu_custom_call.1} parent=5 // pred_check_branch
        %180 = sbr.rel (%p178) target = $region32
      $region31: #{tpu_custom_call.1} parent=5 // pred_region
        // Predicated region
        $region33: #{tpu_custom_call.1} parent=31 // pred_check
          %p181 = pneg %p34
        $region34: #{tpu_custom_call.1} parent=31 // pred_check_branch
          %183 = sbr.rel (%p181) target = $region36
        $region35: #{tpu_custom_call.1} parent=31 // pred_region
          %p184 = scmp.lt.s32.totalorder %s14, 1
          %s185 = scalar_select %p184, %s14, 1
          %s186 = smul.addr %s185, 2
          %s187 = scalar_lea.vmem %s0, %s186
        $region36: #{tpu_custom_call.1} parent=31 // pred_fallthru
          _
      $region32: #{tpu_custom_call.1} parent=5 // pred_fallthru
        _
      %p188 = scmp.le.s32.totalorder 1, %s14
      %p189 = scmp.lt.s32.totalorder %s14, 3
      %p190 = pnand %p188, %p189
      %p191 = pneg %p190
      // Predicated region
      $region37: #{tpu_custom_call.1} parent=5 // pred_check
        _
      $region38: #{tpu_custom_call.1} parent=5 // pred_check_branch
        %193 = sbr.rel (%p190) target = $region40
      $region39: #{tpu_custom_call.1} parent=5 // pred_region
        %s194 = ssub.s32 %s14, 1
        %p195 = scmp.lt.s32.totalorder %s19, 1
        %s196 = scalar_select %p195, %s19, 1
        %s197 = smul.addr %s196, 2
        %s198 = scalar_lea.vmem %s0, %s197
        %p199 = pneg %p40
        %p200 = pneg %p37
        %p201 = pneg %p61
        %p202 = pneg %p58
        %p203 = pneg %p82
        %p204 = pneg %p79
        %p205 = pneg %p103
        %p206 = pneg %p100
        %p207 = pneg %p124
        %p208 = pneg %p121
        %p209 = pneg %p150
        %p210 = pneg %p147
        %s211 = sand.u32 %s137, 1
        %s212 = scalar_lea.sflag [#allocation3], %s211
        %s213 = sand.u32 %s137, 1
        %s214 = smul.addr %s213, 4
        %s215 = scalar_lea.vmem [#allocation2], %s214
        %p216 = scmp.lt.s32.totalorder %s19, 1
        %s217 = scalar_select %p216, %s19, 1
        %s218 = smul.addr %s217, 2
        %s219 = scalar_lea.vmem %s0, %s218
        %v220 = vld [vmem:[%s219] sm:$0x3]
        %v221 = vld [vmem:[%s1] sm:$0xff]
        %v222 = vld [vmem:[%s1 + $0x8] sm:$0xff]
        %224 = vset.pattern.permute.xlu0 0
        %225 = vperm.xlu0 %224, %v221
        %v226 = vpop.permute.xlu0 %225
        %229 = vset.pattern.permute.xlu0 0
        %230 = vperm.xlu0 %229, %v222
        %v231 = vpop.permute.xlu0 %230
        %v233 = vperm.slane %v220, 0
        %v234 = vmul.f32 %v226, %v233
        %v235 = vmul.f32 %v231, %v233
        %v236 = vld [vmem:[%s2] sm:$0xff]
        %v237 = vld [vmem:[%s2 + $0x8] sm:$0xff]
        %239 = vset.pattern.permute.xlu0 0
        %240 = vperm.xlu0 %239, %v236
        %v241 = vpop.permute.xlu0 %240
        %244 = vset.pattern.permute.xlu0 0
        %245 = vperm.xlu0 %244, %v237
        %v246 = vpop.permute.xlu0 %245
        %v248 = vperm.slane %v220, 1
        %v249 = vmul.f32 %v241, %v248
        %v250 = vmul.f32 %v246, %v248
        %v251 = vadd.f32 %v234, %v249
        %v252 = vadd.f32 %v235, %v250
        %v253 = vld [vmem:[%s3] sm:$0xf]
        %v254 = vand.u32 2147483647, %v251
        %vm255 = vcmp.le.f32.partialorder %v254, 0.7853982
        %vm256 = vcmp.lt.s32.totalorder %v251, 0
        %v257 = vand.u32 %v251, 2139095040
        %v258 = vshrl.u32 %v257, 23
        %v259 = vsub.s32 %v258, 127
        %v260 = vand.u32 2147483647, %v251
        %v261 = vand.u32 %v260, 8388607
        %v262 = vor.u32 %v261, 8388608
        %v263 = vsub.s32 0, %v262
        %v264 = vadd.s32 %v259, 1
        %vm265 = vcmp.gt.s32.totalorder %v264, 0
        %v266 = vsel %vm265, %v264, 0
        %v267 = vshrl.u32 %v266, 5
        %v268 = vand.u32 %v266, 31
        %v269 = vsub.s32 32, %v268
        %v270 = vshrl.u32 683565275, %v269
        %v271 = vshll.u32 683565275, %v268
        %v272 = vshrl.u32 2475754826, %v269
        %v273 = vor.u32 %v271, %v272
        %v274 = vshll.u32 2475754826, %v268
        %v275 = vshrl.u32 2131351028, %v269
        %v276 = vor.u32 %v274, %v275
        %v277 = vshll.u32 2131351028, %v268
        %v278 = vshrl.u32 2102212464, %v269
        %v279 = vor.u32 %v277, %v278
        %v280 = vshll.u32 2102212464, %v268
        %v281 = vshrl.u32 920167782, %v269
        %v282 = vor.u32 %v280, %v281
        %v283 = vshll.u32 920167782, %v268
        %v284 = vshrl.u32 1326507024, %v269
        %v285 = vor.u32 %v283, %v284
        %vm286 = vcmp.lt.s32.totalorder %v267, 1
        %vm287 = vcmp.lt.s32.totalorder %v267, 2
        %vm288 = vcmp.lt.s32.totalorder %v267, 3
        %vm289 = vcmp.lt.s32.totalorder %v267, 4
        %v290 = vsel %vm286, %v270, %v273
        %v291 = vsel %vm289, %v279, 2102212464
        %v292 = vsel %vm288, %v276, %v291
        %v293 = vsel %vm287, %v290, %v292
        %v294 = vsel %vm286, %v273, %v276
        %v295 = vsel %vm289, %v282, 920167782
        %v296 = vsel %vm288, %v279, %v295
        %v297 = vsel %vm287, %v294, %v296
        %v298 = vsel %vm286, %v276, %v279
        %v299 = vsel %vm289, %v285, 1326507024
        %v300 = vsel %vm288, %v282, %v299
        %v301 = vsel %vm287, %v298, %v300
        %v302 = vshll.u32 %v262, 8
        %v303 = vand.u32 %v302, 65535
        %v304 = vshrl.u32 %v302, 16
        %v305 = vand.u32 %v301, 65535
        %v306 = vshrl.u32 %v301, 16
        %v307 = vmul.u32 %v303, %v305
        %v308 = vmul.u32 %v303, %v306
        %v309 = vmul.u32 %v304, %v305
        %v310 = vmul.u32 %v304, %v306
        %v311 = vshll.u32 %v308, 16
        %v312 = vshrl.u32 %v308, 16
        %v313 = vshll.u32 %v309, 16
        %v314 = vshrl.u32 %v309, 16
        %vm315 = vc.u32 %v307, %v311
        %v316 = vsel %vm315, 1, 0
        %v317 = vadd.s32 %v307, %v311
        %v318 = vadd.s32 %v310, %v316
        %vm319 = vc.u32 %v317, %v313
        %v320 = vsel %vm319, 1, 0
        %v321 = vadd.s32 %v317, %v313
        %v322 = vadd.s32 %v318, %v320
        %v323 = vadd.s32 %v322, %v312
        %v324 = vadd.s32 %v323, %v314
        %v325 = vand.u32 %v302, 65535
        %v326 = vshrl.u32 %v302, 16
        %v327 = vand.u32 %v297, 65535
        %v328 = vshrl.u32 %v297, 16
        %v329 = vmul.u32 %v325, %v327
        %v330 = vmul.u32 %v325, %v328
        %v331 = vmul.u32 %v326, %v327
        %v332 = vmul.u32 %v326, %v328
        %v333 = vshll.u32 %v330, 16
        %v334 = vshrl.u32 %v330, 16
        %v335 = vshll.u32 %v331, 16
        %v336 = vshrl.u32 %v331, 16
        %vm337 = vc.u32 %v329, %v333
        %v338 = vsel %vm337, 1, 0
        %v339 = vadd.s32 %v329, %v333
        %v340 = vadd.s32 %v332, %v338
        %vm341 = vc.u32 %v339, %v335
        %v342 = vsel %vm341, 1, 0
        %v343 = vadd.s32 %v339, %v335
        %v344 = vadd.s32 %v340, %v342
        %v345 = vadd.s32 %v344, %v334
        %v346 = vadd.s32 %v345, %v336
        %v347 = vmul.u32 %v302, %v293
        %v348 = vadd.s32 %v324, %v343
        %vm349 = vc.u32 %v324, %v343
        %v350 = vadd.s32 %v346, 1
        %v351 = vsel %vm349, %v350, %v346
        %v352 = vadd.s32 %v347, %v351
        %v353 = vadd.s32 %v352, 536870912
        %v354 = vshrl.u32 %v353, 30
        %v355 = vshll.u32 %v354, 30
        %v356 = vsub.s32 %v352, %v355
        %vm357 = vcmp.lt.s32.totalorder %v356, 0
        %v358 = vsub.s32 0, %v356
        %v359 = vsel %vm357, %v358, %v356
        %v360 = vclz %v359
        %v361 = vsub.s32 %v360, 2
        %vm362 = vcmp.gt.s32.totalorder 0, %v361
        %v363 = vsel %vm362, 0, %v361
        %v364 = vsub.s32 32, %v363
        %v365 = vshll.u32 %v356, %v363
        %v366 = vshrl.u32 %v348, %v364
        %v367 = vor.u32 %v365, %v366
        %v368 = vsub.s32 4294967266, %v363
        %v369 = vadd.s32 %v368, 127
        %v370 = vshll.u32 %v369, 23
        %v371 = vor.u32 4788187, %v370
        %v372 = vand.u32 2147483647, %v371
        %v374 = vcvt.s32.f32 %v367
        %v375 = vmul.f32 %v374, %v372
        %v376 = vxor.u32 %v375, 2147483648
        %v377 = vsel %vm256, %v376, %v375
        %v378 = vsub.s32 4, %v354
        %v379 = vsel %vm256, %v378, %v354
        %v380 = vsel %vm255, %v251, %v377
        %v381 = vsel %vm255, 0, %v379
        %v382 = vmul.f32 %v380, %v380
        %v383 = vmul.f32 %v382, -0.001358992
        %v384 = vadd.f32 %v383, 0.041655596
        %v385 = vmul.f32 %v382, %v384
        %v386 = vadd.f32 %v385, -0.4999988
        %v387 = vmul.f32 %v382, %v386
        %v388 = vadd.f32 1.0, %v387
        %v389 = vmul.f32 %v380, %v380
        %v390 = vmul.f32 %v389, -0.00019511016
        %v391 = vadd.f32 %v390, 0.008332121
        %v392 = vmul.f32 %v389, %v391
        %v393 = vadd.f32 %v392, -0.16666654
        %v394 = vmul.f32 %v389, %v393
        %v395 = vadd.f32 %v394, 1.0
        %v396 = vmul.f32 %v395, %v380
        %vm397 = vweird.f32 %v251
        %v398 = vand.u32 %v381, 3
        %vm399 = vcmp.lt.s32.totalorder %v398, 2
        %vm400 = vcmp.eq.s32.totalorder %v398, 0
        %v401 = vxor.u32 %v396, 2147483648
        %v402 = vsel %vm400, %v388, %v401
        %vm403 = vcmp.eq.s32.totalorder %v398, 2
        %v404 = vxor.u32 %v388, 2147483648
        %v405 = vsel %vm403, %v404, %v396
        %v406 = vsel %vm399, %v402, %v405
        %v407 = vsel %vm397, nan, %v406
        %v408 = vand.u32 2147483647, %v252
        %vm409 = vcmp.le.f32.partialorder %v408, 0.7853982
        %vm410 = vcmp.lt.s32.totalorder %v252, 0
        %v411 = vand.u32 %v252, 2139095040
        %v412 = vshrl.u32 %v411, 23
        %v413 = vsub.s32 %v412, 127
        %v414 = vand.u32 2147483647, %v252
        %v415 = vand.u32 %v414, 8388607
        %v416 = vor.u32 %v415, 8388608
        %v417 = vsub.s32 0, %v416
        %v418 = vadd.s32 %v413, 1
        %vm419 = vcmp.gt.s32.totalorder %v418, 0
        %v420 = vsel %vm419, %v418, 0
        %v421 = vshrl.u32 %v420, 5
        %v422 = vand.u32 %v420, 31
        %v423 = vsub.s32 32, %v422
        %v424 = vshrl.u32 683565275, %v423
        %v425 = vshll.u32 683565275, %v422
        %v426 = vshrl.u32 2475754826, %v423
        %v427 = vor.u32 %v425, %v426
        %v428 = vshll.u32 2475754826, %v422
        %v429 = vshrl.u32 2131351028, %v423
        %v430 = vor.u32 %v428, %v429
        %v431 = vshll.u32 2131351028, %v422
        %v432 = vshrl.u32 2102212464, %v423
        %v433 = vor.u32 %v431, %v432
        %v434 = vshll.u32 2102212464, %v422
        %v435 = vshrl.u32 920167782, %v423
        %v436 = vor.u32 %v434, %v435
        %v437 = vshll.u32 920167782, %v422
        %v438 = vshrl.u32 1326507024, %v423
        %v439 = vor.u32 %v437, %v438
        %vm440 = vcmp.lt.s32.totalorder %v421, 1
        %vm441 = vcmp.lt.s32.totalorder %v421, 2
        %vm442 = vcmp.lt.s32.totalorder %v421, 3
        %vm443 = vcmp.lt.s32.totalorder %v421, 4
        %v444 = vsel %vm440, %v424, %v427
        %v445 = vsel %vm443, %v433, 2102212464
        %v446 = vsel %vm442, %v430, %v445
        %v447 = vsel %vm441, %v444, %v446
        %v448 = vsel %vm440, %v427, %v430
        %v449 = vsel %vm443, %v436, 920167782
        %v450 = vsel %vm442, %v433, %v449
        %v451 = vsel %vm441, %v448, %v450
        %v452 = vsel %vm440, %v430, %v433
        %v453 = vsel %vm443, %v439, 1326507024
        %v454 = vsel %vm442, %v436, %v453
        %v455 = vsel %vm441, %v452, %v454
        %v456 = vshll.u32 %v416, 8
        %v457 = vand.u32 %v456, 65535
        %v458 = vshrl.u32 %v456, 16
        %v459 = vand.u32 %v455, 65535
        %v460 = vshrl.u32 %v455, 16
        %v461 = vmul.u32 %v457, %v459
        %v462 = vmul.u32 %v457, %v460
        %v463 = vmul.u32 %v458, %v459
        %v464 = vmul.u32 %v458, %v460
        %v465 = vshll.u32 %v462, 16
        %v466 = vshrl.u32 %v462, 16
        %v467 = vshll.u32 %v463, 16
        %v468 = vshrl.u32 %v463, 16
        %vm469 = vc.u32 %v461, %v465
        %v470 = vsel %vm469, 1, 0
        %v471 = vadd.s32 %v461, %v465
        %v472 = vadd.s32 %v464, %v470
        %vm473 = vc.u32 %v471, %v467
        %v474 = vsel %vm473, 1, 0
        %v475 = vadd.s32 %v471, %v467
        %v476 = vadd.s32 %v472, %v474
        %v477 = vadd.s32 %v476, %v466
        %v478 = vadd.s32 %v477, %v468
        %v479 = vand.u32 %v456, 65535
        %v480 = vshrl.u32 %v456, 16
        %v481 = vand.u32 %v451, 65535
        %v482 = vshrl.u32 %v451, 16
        %v483 = vmul.u32 %v479, %v481
        %v484 = vmul.u32 %v479, %v482
        %v485 = vmul.u32 %v480, %v481
        %v486 = vmul.u32 %v480, %v482
        %v487 = vshll.u32 %v484, 16
        %v488 = vshrl.u32 %v484, 16
        %v489 = vshll.u32 %v485, 16
        %v490 = vshrl.u32 %v485, 16
        %vm491 = vc.u32 %v483, %v487
        %v492 = vsel %vm491, 1, 0
        %v493 = vadd.s32 %v483, %v487
        %v494 = vadd.s32 %v486, %v492
        %vm495 = vc.u32 %v493, %v489
        %v496 = vsel %vm495, 1, 0
        %v497 = vadd.s32 %v493, %v489
        %v498 = vadd.s32 %v494, %v496
        %v499 = vadd.s32 %v498, %v488
        %v500 = vadd.s32 %v499, %v490
        %v501 = vmul.u32 %v456, %v447
        %v502 = vadd.s32 %v478, %v497
        %vm503 = vc.u32 %v478, %v497
        %v504 = vadd.s32 %v500, 1
        %v505 = vsel %vm503, %v504, %v500
        %v506 = vadd.s32 %v501, %v505
        %v507 = vadd.s32 %v506, 536870912
        %v508 = vshrl.u32 %v507, 30
        %v509 = vshll.u32 %v508, 30
        %v510 = vsub.s32 %v506, %v509
        %vm511 = vcmp.lt.s32.totalorder %v510, 0
        %v512 = vsub.s32 0, %v510
        %v513 = vsel %vm511, %v512, %v510
        %v514 = vclz %v513
        %v515 = vsub.s32 %v514, 2
        %vm516 = vcmp.gt.s32.totalorder 0, %v515
        %v517 = vsel %vm516, 0, %v515
        %v518 = vsub.s32 32, %v517
        %v519 = vshll.u32 %v510, %v517
        %v520 = vshrl.u32 %v502, %v518
        %v521 = vor.u32 %v519, %v520
        %v522 = vsub.s32 4294967266, %v517
        %v523 = vadd.s32 %v522, 127
        %v524 = vshll.u32 %v523, 23
        %v525 = vor.u32 4788187, %v524
        %v526 = vand.u32 2147483647, %v525
        %v528 = vcvt.s32.f32 %v521
        %v529 = vmul.f32 %v528, %v526
        %v530 = vxor.u32 %v529, 2147483648
        %v531 = vsel %vm410, %v530, %v529
        %v532 = vsub.s32 4, %v508
        %v533 = vsel %vm410, %v532, %v508
        %v534 = vsel %vm409, %v252, %v531
        %v535 = vsel %vm409, 0, %v533
        %v536 = vmul.f32 %v534, %v534
        %v537 = vmul.f32 %v536, -0.001358992
        %v538 = vadd.f32 %v537, 0.041655596
        %v539 = vmul.f32 %v536, %v538
        %v540 = vadd.f32 %v539, -0.4999988
        %v541 = vmul.f32 %v536, %v540
        %v542 = vadd.f32 1.0, %v541
        %v543 = vmul.f32 %v534, %v534
        %v544 = vmul.f32 %v543, -0.00019511016
        %v545 = vadd.f32 %v544, 0.008332121
        %v546 = vmul.f32 %v543, %v545
        %v547 = vadd.f32 %v546, -0.16666654
        %v548 = vmul.f32 %v543, %v547
        %v549 = vadd.f32 %v548, 1.0
        %v550 = vmul.f32 %v549, %v534
        %vm551 = vweird.f32 %v252
        %v552 = vand.u32 %v535, 3
        %vm553 = vcmp.lt.s32.totalorder %v552, 2
        %vm554 = vcmp.eq.s32.totalorder %v552, 0
        %v555 = vxor.u32 %v550, 2147483648
        %v556 = vsel %vm554, %v542, %v555
        %vm557 = vcmp.eq.s32.totalorder %v552, 2
        %v558 = vxor.u32 %v542, 2147483648
        %v559 = vsel %vm557, %v558, %v550
        %v560 = vsel %vm553, %v556, %v559
        %v561 = vsel %vm551, nan, %v560
        %v562 = vld [vmem:[%s4] sm:$0xf]
        %v563 = vand.u32 2147483647, %v251
        %vm564 = vcmp.le.f32.partialorder %v563, 0.7853982
        %vm565 = vcmp.lt.s32.totalorder %v251, 0
        %v566 = vand.u32 %v251, 2139095040
        %v567 = vshrl.u32 %v566, 23
        %v568 = vsub.s32 %v567, 127
        %v569 = vand.u32 2147483647, %v251
        %v570 = vand.u32 %v569, 8388607
        %v571 = vor.u32 %v570, 8388608
        %v572 = vsub.s32 0, %v571
        %v573 = vadd.s32 %v568, 1
        %vm574 = vcmp.gt.s32.totalorder %v573, 0
        %v575 = vsel %vm574, %v573, 0
        %v576 = vshrl.u32 %v575, 5
        %v577 = vand.u32 %v575, 31
        %v578 = vsub.s32 32, %v577
        %v579 = vshrl.u32 683565275, %v578
        %v580 = vshll.u32 683565275, %v577
        %v581 = vshrl.u32 2475754826, %v578
        %v582 = vor.u32 %v580, %v581
        %v583 = vshll.u32 2475754826, %v577
        %v584 = vshrl.u32 2131351028, %v578
        %v585 = vor.u32 %v583, %v584
        %v586 = vshll.u32 2131351028, %v577
        %v587 = vshrl.u32 2102212464, %v578
        %v588 = vor.u32 %v586, %v587
        %v589 = vshll.u32 2102212464, %v577
        %v590 = vshrl.u32 920167782, %v578
        %v591 = vor.u32 %v589, %v590
        %v592 = vshll.u32 920167782, %v577
        %v593 = vshrl.u32 1326507024, %v578
        %v594 = vor.u32 %v592, %v593
        %vm595 = vcmp.lt.s32.totalorder %v576, 1
        %vm596 = vcmp.lt.s32.totalorder %v576, 2
        %vm597 = vcmp.lt.s32.totalorder %v576, 3
        %vm598 = vcmp.lt.s32.totalorder %v576, 4
        %v599 = vsel %vm595, %v579, %v582
        %v600 = vsel %vm598, %v588, 2102212464
        %v601 = vsel %vm597, %v585, %v600
        %v602 = vsel %vm596, %v599, %v601
        %v603 = vsel %vm595, %v582, %v585
        %v604 = vsel %vm598, %v591, 920167782
        %v605 = vsel %vm597, %v588, %v604
        %v606 = vsel %vm596, %v603, %v605
        %v607 = vsel %vm595, %v585, %v588
        %v608 = vsel %vm598, %v594, 1326507024
        %v609 = vsel %vm597, %v591, %v608
        %v610 = vsel %vm596, %v607, %v609
        %v611 = vshll.u32 %v571, 8
        %v612 = vand.u32 %v611, 65535
        %v613 = vshrl.u32 %v611, 16
        %v614 = vand.u32 %v610, 65535
        %v615 = vshrl.u32 %v610, 16
        %v616 = vmul.u32 %v612, %v614
        %v617 = vmul.u32 %v612, %v615
        %v618 = vmul.u32 %v613, %v614
        %v619 = vmul.u32 %v613, %v615
        %v620 = vshll.u32 %v617, 16
        %v621 = vshrl.u32 %v617, 16
        %v622 = vshll.u32 %v618, 16
        %v623 = vshrl.u32 %v618, 16
        %vm624 = vc.u32 %v616, %v620
        %v625 = vsel %vm624, 1, 0
        %v626 = vadd.s32 %v616, %v620
        %v627 = vadd.s32 %v619, %v625
        %vm628 = vc.u32 %v626, %v622
        %v629 = vsel %vm628, 1, 0
        %v630 = vadd.s32 %v626, %v622
        %v631 = vadd.s32 %v627, %v629
        %v632 = vadd.s32 %v631, %v621
        %v633 = vadd.s32 %v632, %v623
        %v634 = vand.u32 %v611, 65535
        %v635 = vshrl.u32 %v611, 16
        %v636 = vand.u32 %v606, 65535
        %v637 = vshrl.u32 %v606, 16
        %v638 = vmul.u32 %v634, %v636
        %v639 = vmul.u32 %v634, %v637
        %v640 = vmul.u32 %v635, %v636
        %v641 = vmul.u32 %v635, %v637
        %v642 = vshll.u32 %v639, 16
        %v643 = vshrl.u32 %v639, 16
        %v644 = vshll.u32 %v640, 16
        %v645 = vshrl.u32 %v640, 16
        %vm646 = vc.u32 %v638, %v642
        %v647 = vsel %vm646, 1, 0
        %v648 = vadd.s32 %v638, %v642
        %v649 = vadd.s32 %v641, %v647
        %vm650 = vc.u32 %v648, %v644
        %v651 = vsel %vm650, 1, 0
        %v652 = vadd.s32 %v648, %v644
        %v653 = vadd.s32 %v649, %v651
        %v654 = vadd.s32 %v653, %v643
        %v655 = vadd.s32 %v654, %v645
        %v656 = vmul.u32 %v611, %v602
        %v657 = vadd.s32 %v633, %v652
        %vm658 = vc.u32 %v633, %v652
        %v659 = vadd.s32 %v655, 1
        %v660 = vsel %vm658, %v659, %v655
        %v661 = vadd.s32 %v656, %v660
        %v662 = vadd.s32 %v661, 536870912
        %v663 = vshrl.u32 %v662, 30
        %v664 = vshll.u32 %v663, 30
        %v665 = vsub.s32 %v661, %v664
        %vm666 = vcmp.lt.s32.totalorder %v665, 0
        %v667 = vsub.s32 0, %v665
        %v668 = vsel %vm666, %v667, %v665
        %v669 = vclz %v668
        %v670 = vsub.s32 %v669, 2
        %vm671 = vcmp.gt.s32.totalorder 0, %v670
        %v672 = vsel %vm671, 0, %v670
        %v673 = vsub.s32 32, %v672
        %v674 = vshll.u32 %v665, %v672
        %v675 = vshrl.u32 %v657, %v673
        %v676 = vor.u32 %v674, %v675
        %v677 = vsub.s32 4294967266, %v672
        %v678 = vadd.s32 %v677, 127
        %v679 = vshll.u32 %v678, 23
        %v680 = vor.u32 4788187, %v679
        %v681 = vand.u32 2147483647, %v680
        %v683 = vcvt.s32.f32 %v676
        %v684 = vmul.f32 %v683, %v681
        %v685 = vxor.u32 %v684, 2147483648
        %v686 = vsel %vm565, %v685, %v684
        %v687 = vsub.s32 4, %v663
        %v688 = vsel %vm565, %v687, %v663
        %v689 = vsel %vm564, %v251, %v686
        %v690 = vsel %vm564, 0, %v688
        %v691 = vmul.f32 %v689, %v689
        %v692 = vmul.f32 %v691, -0.001358992
        %v693 = vadd.f32 %v692, 0.041655596
        %v694 = vmul.f32 %v691, %v693
        %v695 = vadd.f32 %v694, -0.4999988
        %v696 = vmul.f32 %v691, %v695
        %v697 = vadd.f32 1.0, %v696
        %v698 = vmul.f32 %v689, %v689
        %v699 = vmul.f32 %v698, -0.00019511016
        %v700 = vadd.f32 %v699, 0.008332121
        %v701 = vmul.f32 %v698, %v700
        %v702 = vadd.f32 %v701, -0.16666654
        %v703 = vmul.f32 %v698, %v702
        %v704 = vadd.f32 %v703, 1.0
        %v705 = vmul.f32 %v704, %v689
        %vm706 = vweird.f32 %v251
        %v707 = vadd.s32 %v690, 3
        %v708 = vand.u32 %v707, 3
        %vm709 = vcmp.lt.s32.totalorder %v708, 2
        %vm710 = vcmp.eq.s32.totalorder %v708, 0
        %v711 = vxor.u32 %v705, 2147483648
        %v712 = vsel %vm710, %v697, %v711
        %vm713 = vcmp.eq.s32.totalorder %v708, 2
        %v714 = vxor.u32 %v697, 2147483648
        %v715 = vsel %vm713, %v714, %v705
        %v716 = vsel %vm709, %v712, %v715
        %v717 = vsel %vm706, nan, %v716
        %v718 = vand.u32 2147483647, %v252
        %vm719 = vcmp.le.f32.partialorder %v718, 0.7853982
        %vm720 = vcmp.lt.s32.totalorder %v252, 0
        %v721 = vand.u32 %v252, 2139095040
        %v722 = vshrl.u32 %v721, 23
        %v723 = vsub.s32 %v722, 127
        %v724 = vand.u32 2147483647, %v252
        %v725 = vand.u32 %v724, 8388607
        %v726 = vor.u32 %v725, 8388608
        %v727 = vsub.s32 0, %v726
        %v728 = vadd.s32 %v723, 1
        %vm729 = vcmp.gt.s32.totalorder %v728, 0
        %v730 = vsel %vm729, %v728, 0
        %v731 = vshrl.u32 %v730, 5
        %v732 = vand.u32 %v730, 31
        %v733 = vsub.s32 32, %v732
        %v734 = vshrl.u32 683565275, %v733
        %v735 = vshll.u32 683565275, %v732
        %v736 = vshrl.u32 2475754826, %v733
        %v737 = vor.u32 %v735, %v736
        %v738 = vshll.u32 2475754826, %v732
        %v739 = vshrl.u32 2131351028, %v733
        %v740 = vor.u32 %v738, %v739
        %v741 = vshll.u32 2131351028, %v732
        %v742 = vshrl.u32 2102212464, %v733
        %v743 = vor.u32 %v741, %v742
        %v744 = vshll.u32 2102212464, %v732
        %v745 = vshrl.u32 920167782, %v733
        %v746 = vor.u32 %v744, %v745
        %v747 = vshll.u32 920167782, %v732
        %v748 = vshrl.u32 1326507024, %v733
        %v749 = vor.u32 %v747, %v748
        %vm750 = vcmp.lt.s32.totalorder %v731, 1
        %vm751 = vcmp.lt.s32.totalorder %v731, 2
        %vm752 = vcmp.lt.s32.totalorder %v731, 3
        %vm753 = vcmp.lt.s32.totalorder %v731, 4
        %v754 = vsel %vm750, %v734, %v737
        %v755 = vsel %vm753, %v743, 2102212464
        %v756 = vsel %vm752, %v740, %v755
        %v757 = vsel %vm751, %v754, %v756
        %v758 = vsel %vm750, %v737, %v740
        %v759 = vsel %vm753, %v746, 920167782
        %v760 = vsel %vm752, %v743, %v759
        %v761 = vsel %vm751, %v758, %v760
        %v762 = vsel %vm750, %v740, %v743
        %v763 = vsel %vm753, %v749, 1326507024
        %v764 = vsel %vm752, %v746, %v763
        %v765 = vsel %vm751, %v762, %v764
        %v766 = vshll.u32 %v726, 8
        %v767 = vand.u32 %v766, 65535
        %v768 = vshrl.u32 %v766, 16
        %v769 = vand.u32 %v765, 65535
        %v770 = vshrl.u32 %v765, 16
        %v771 = vmul.u32 %v767, %v769
        %v772 = vmul.u32 %v767, %v770
        %v773 = vmul.u32 %v768, %v769
        %v774 = vmul.u32 %v768, %v770
        %v775 = vshll.u32 %v772, 16
        %v776 = vshrl.u32 %v772, 16
        %v777 = vshll.u32 %v773, 16
        %v778 = vshrl.u32 %v773, 16
        %vm779 = vc.u32 %v771, %v775
        %v780 = vsel %vm779, 1, 0
        %v781 = vadd.s32 %v771, %v775
        %v782 = vadd.s32 %v774, %v780
        %vm783 = vc.u32 %v781, %v777
        %v784 = vsel %vm783, 1, 0
        %v785 = vadd.s32 %v781, %v777
        %v786 = vadd.s32 %v782, %v784
        %v787 = vadd.s32 %v786, %v776
        %v788 = vadd.s32 %v787, %v778
        %v789 = vand.u32 %v766, 65535
        %v790 = vshrl.u32 %v766, 16
        %v791 = vand.u32 %v761, 65535
        %v792 = vshrl.u32 %v761, 16
        %v793 = vmul.u32 %v789, %v791
        %v794 = vmul.u32 %v789, %v792
        %v795 = vmul.u32 %v790, %v791
        %v796 = vmul.u32 %v790, %v792
        %v797 = vshll.u32 %v794, 16
        %v798 = vshrl.u32 %v794, 16
        %v799 = vshll.u32 %v795, 16
        %v800 = vshrl.u32 %v795, 16
        %vm801 = vc.u32 %v793, %v797
        %v802 = vsel %vm801, 1, 0
        %v803 = vadd.s32 %v793, %v797
        %v804 = vadd.s32 %v796, %v802
        %vm805 = vc.u32 %v803, %v799
        %v806 = vsel %vm805, 1, 0
        %v807 = vadd.s32 %v803, %v799
        %v808 = vadd.s32 %v804, %v806
        %v809 = vadd.s32 %v808, %v798
        %v810 = vadd.s32 %v809, %v800
        %v811 = vmul.u32 %v766, %v757
        %v812 = vadd.s32 %v788, %v807
        %vm813 = vc.u32 %v788, %v807
        %v814 = vadd.s32 %v810, 1
        %v815 = vsel %vm813, %v814, %v810
        %v816 = vadd.s32 %v811, %v815
        %v817 = vadd.s32 %v816, 536870912
        %v818 = vshrl.u32 %v817, 30
        %v819 = vshll.u32 %v818, 30
        %v820 = vsub.s32 %v816, %v819
        %vm821 = vcmp.lt.s32.totalorder %v820, 0
        %v822 = vsub.s32 0, %v820
        %v823 = vsel %vm821, %v822, %v820
        %v824 = vclz %v823
        %v825 = vsub.s32 %v824, 2
        %vm826 = vcmp.gt.s32.totalorder 0, %v825
        %v827 = vsel %vm826, 0, %v825
        %v828 = vsub.s32 32, %v827
        %v829 = vshll.u32 %v820, %v827
        %v830 = vshrl.u32 %v812, %v828
        %v831 = vor.u32 %v829, %v830
        %v832 = vsub.s32 4294967266, %v827
        %v833 = vadd.s32 %v832, 127
        %v834 = vshll.u32 %v833, 23
        %v835 = vor.u32 4788187, %v834
        %v836 = vand.u32 2147483647, %v835
        %v838 = vcvt.s32.f32 %v831
        %v839 = vmul.f32 %v838, %v836
        %v840 = vxor.u32 %v839, 2147483648
        %v841 = vsel %vm720, %v840, %v839
        %v842 = vsub.s32 4, %v818
        %v843 = vsel %vm720, %v842, %v818
        %v844 = vsel %vm719, %v252, %v841
        %v845 = vsel %vm719, 0, %v843
        %v846 = vmul.f32 %v844, %v844
        %v847 = vmul.f32 %v846, -0.001358992
        %v848 = vadd.f32 %v847, 0.041655596
        %v849 = vmul.f32 %v846, %v848
        %v850 = vadd.f32 %v849, -0.4999988
        %v851 = vmul.f32 %v846, %v850
        %v852 = vadd.f32 1.0, %v851
        %v853 = vmul.f32 %v844, %v844
        %v854 = vmul.f32 %v853, -0.00019511016
        %v855 = vadd.f32 %v854, 0.008332121
        %v856 = vmul.f32 %v853, %v855
        %v857 = vadd.f32 %v856, -0.16666654
        %v858 = vmul.f32 %v853, %v857
        %v859 = vadd.f32 %v858, 1.0
        %v860 = vmul.f32 %v859, %v844
        %vm861 = vweird.f32 %v252
        %v862 = vadd.s32 %v845, 3
        %v863 = vand.u32 %v862, 3
        %vm864 = vcmp.lt.s32.totalorder %v863, 2
        %vm865 = vcmp.eq.s32.totalorder %v863, 0
        %v866 = vxor.u32 %v860, 2147483648
        %v867 = vsel %vm865, %v852, %v866
        %vm868 = vcmp.eq.s32.totalorder %v863, 2
        %v869 = vxor.u32 %v852, 2147483648
        %v870 = vsel %vm868, %v869, %v860
        %v871 = vsel %vm864, %v867, %v870
        %v872 = vsel %vm861, nan, %v871
        %vm873 = vcmask 130048
        %v875 = vsel %vm873, %v562, 0
        %877 = vmatpush.msra.mxu0 0.0
        %878 = vmatpush.msra.mxu0 0.0
        %879 = vmatpush.msra.mxu0 0.0
        %880 = vmatpush.msra.mxu0 0.0
        %881 = vmatpush.msra.mxu0 0.0
        %882 = vmatpush.msra.mxu0 0.0
        %883 = vmatpush.msra.mxu0 0.0
        %884 = vmatpush.msra.mxu0 0.0
        %885 = vmatpush.msra.mxu0 0.0
        %886 = vmatpush.msra.mxu0 0.0
        %887 = vmatpush.msra.mxu0 0.0
        %888 = vmatpush.msra.mxu0 0.0
        %889 = vmatpush.msra.mxu0 0.0
        %890 = vmatpush.msra.mxu0 0.0
        %891 = vmatpush.msra.mxu0 %v872
        %892 = vmatpush.msra.mxu0 %v717
        %893 = vmatmul.f32.gmra.mxu0 %v875
        %v894 = vpop.f32.mrf.mxu0
        %v895 = vadd.f32 0.0, %v894
        %896 = vdwg.mxu0
        %v898 = vsel %vm873, %v253, 0
        %900 = vmatpush.msra.mxu0 0.0
        %901 = vmatpush.msra.mxu0 0.0
        %902 = vmatpush.msra.mxu0 0.0
        %903 = vmatpush.msra.mxu0 0.0
        %904 = vmatpush.msra.mxu0 0.0
        %905 = vmatpush.msra.mxu0 0.0
        %906 = vmatpush.msra.mxu0 0.0
        %907 = vmatpush.msra.mxu0 0.0
        %908 = vmatpush.msra.mxu0 0.0
        %909 = vmatpush.msra.mxu0 0.0
        %910 = vmatpush.msra.mxu0 0.0
        %911 = vmatpush.msra.mxu0 0.0
        %912 = vmatpush.msra.mxu0 0.0
        %913 = vmatpush.msra.mxu0 0.0
        %914 = vmatpush.msra.mxu0 %v561
        %915 = vmatpush.msra.mxu0 %v407
        %916 = vmatmul.f32.gmra.mxu0 %v898
        %v917 = vpop.f32.mrf.mxu0
        %v918 = vadd.f32 %v895, %v917
        %919 = vdwg.mxu0
        %vm920 = vcmask 27648
        %v921 = vsel %vm920, %v918, -inf
        %922 = vmax.xlane.f32.xlu0 %v921
        %v923 = vpop.xlane.xlu0 %922
        %v924 = vsub.f32 %v918, %v923
        %v925 = vmul.f32 %v924, 1.442695
        %v926 = vpow.pop %v925
        %v927 = vsel %vm920, %v926, 0.0
        %928 = vadd.xlane.f32.xlu0 %v927
        %v929 = vpop.xlane.xlu0 %928
        %v930 = vrcp.pop %v929
        %v931 = vmul.f32 %v929, %v930
        %v932 = vsub.f32 1.0, %v931
        %v933 = vmul.f32 %v930, %v932
        %v934 = vadd.f32 %v930, %v933
        %vm935 = vweird.f32 %v929
        %vm936 = vweird.f32 %v930
        %vm937 = vmor %vm935, %vm936
        %v938 = vsel %vm937, %v930, %v934
        %v939 = vand.u32 2147483647, %v929
        %vm940 = vcmp.eq.f32.partialorder %v939, 8.507059e+37
        %v941 = vand.u32 %v929, 2147483648
        %v942 = vor.u32 1.1754944e-38, %v941
        %v943 = vsel %vm940, %v942, %v938
        %v944 = vmul.f32 %v926, %v943
        %945 = vst.msk [vmem:[%s215] sm:$0xf] %vm920, %v944
        %s946 = sand.u32 %s137, 1
        %s947 = scalar_lea.sflag [#allocation3], %s946
        %s948 = sand.u32 %s137, 1
        %s949 = smul.addr %s948, 4
        %s950 = scalar_lea.vmem [#allocation2], %s949
        // Predicated region
        $region41: #{tpu_custom_call.1} parent=39 // pred_check
          %p951 = pneg %p147
        $region42: #{tpu_custom_call.1} parent=39 // pred_check_branch
          %953 = sbr.rel (%p951) target = $region44
        $region43: #{tpu_custom_call.1} parent=39 // pred_region
          %955 = vsyncadd %s947, 0
          %s956 = smul.addr %s19, 4
          %s957 = scalar_lea.hbm %s5, %s956
          %s959 = sshll.u32 %s950, 4
          %s960 = int_to_ptr.vmem [resolvable:$true] %s959
          %s961 = sshll.u32 %s957, 4
          %s962 = int_to_ptr.hbm [resolvable:$true] %s961
          %964 = dma.vmem_to_hbm [thread:$0]  %s960, 64, %s962, %s947
        $region44: #{tpu_custom_call.1} parent=39 // pred_fallthru
          _
      $region40: #{tpu_custom_call.1} parent=5 // pred_fallthru
        _
      %p965 = scmp.le.s32.totalorder 2, %s14
      // Predicated region
      $region45: #{tpu_custom_call.1} parent=5 // pred_check
        %p966 = pneg %p965
      $region46: #{tpu_custom_call.1} parent=5 // pred_check_branch
        %968 = sbr.rel (%p966) target = $region48
      $region47: #{tpu_custom_call.1} parent=5 // pred_region
        %s969 = ssub.s32 %s14, 2
        // Predicated region
        $region49: #{tpu_custom_call.1} parent=47 // pred_check
          %p970 = pneg %p153
        $region50: #{tpu_custom_call.1} parent=47 // pred_check_branch
          %972 = sbr.rel (%p970) target = $region52
        $region51: #{tpu_custom_call.1} parent=47 // pred_region
          %s973 = sand.u32 %s138, 1
          %s974 = scalar_lea.sflag [#allocation3], %s973
          %s975 = sand.u32 %s138, 1
          %s976 = smul.addr %s975, 4
          %s977 = scalar_lea.vmem [#allocation2], %s976
          %979 = dma.done %s974, 64
        $region52: #{tpu_custom_call.1} parent=47 // pred_fallthru
          _
      $region48: #{tpu_custom_call.1} parent=5 // pred_fallthru
        _
    $region6: #{tpu_custom_call.1} parent=1 // loop_footer
      %s18 = sadd.s32 1, %s14
    $region7: #{tpu_custom_call.1} parent=1 // loop_footer_branch
      %13 = sbr.rel target = $region3
    $region8: #{tpu_custom_call.1} parent=1 // loop_exit
      _
    %980 = vsyncpa [#allocation3], 1
    %s981 = scalar_lea.sflag [#allocation3], 1
    %982 = vsyncpa %s981, 1

</llo_original>
